<compile_context>
chip_gen: v5e
topology: v5e:2x2
jax: 0.10.0
libtpu: 0.0.40
codegen_flags: <defaults>
</compile_context>

<pallas_src>
import functools

import jax
import jax.numpy as jnp
from jax import lax
from jax.experimental import pallas as pl
from jax.experimental.pallas import tpu as pltpu

_NUM_CORES = 2     # v7x has 2 TensorCores per chip; harmless (serial) on v5e/v6e
_LANES = 128


def _round_up(x, m):
    return (x + m - 1) // m * m


def _wraploss_kernel(b_ref, xt_ref, w_ref, t_ref, e_ref, o_ref, acc_ref,
                     *, n, tile_n, tiles_per_core):
    # b_ref  : SMEM (1, 1)        scalar bias
    # xt_ref : VMEM [D, TILE_N]   features on sublanes, batch on lanes (lane-dense)
    # w_ref  : VMEM [D, 1]
    # t_ref  : VMEM [1, TILE_N]   survival times (lane-dense row)
    # e_ref  : VMEM [1, TILE_N]   event indicators (lane-dense row)
    # o_ref  : VMEM [1, 128]      this core's partial loglik sum (broadcast over lanes)
    # acc_ref: VMEM [1, TILE_N]   per-lane running sum of loglik (per-core scratch)
    c = pl.program_id(0)          # core axis ("parallel")
    j = pl.program_id(1)          # batch-tile axis ("arbitrary" reduction)

    @pl.when(j == 0)
    def _init():
        acc_ref[...] = jnp.zeros_like(acc_ref)

    x = xt_ref[...].astype(jnp.float32)                 # [D, TILE_N]
    w = w_ref[...].astype(jnp.float32)                  # [D, 1] -> lane broadcast
    # z[n] = sum_d w[d] * x[d, n] + b : VPU multiply + sublane reduce (XLU)
    z = jnp.sum(w * x, axis=0, keepdims=True) + b_ref[0, 0]   # [1, TILE_N]
    rate = jnp.exp(z)                                    # EUP transcendental
    t = t_ref[...].astype(jnp.float32)
    e = e_ref[...].astype(jnp.float32)
    loglik = e * z - rate * t                            # [1, TILE_N]

    # Ragged-tail / fully-out-of-range tile masking, keyed on the *logical*
    # sample index (no wrapper-side padding; OOB lanes may hold garbage).
    start = (c * tiles_per_core + j) * tile_n
    lane = lax.broadcasted_iota(jnp.int32, (1, tile_n), 1)
    valid = (start + lane) < n
    acc_ref[...] += jnp.where(valid, loglik, 0.0)

    @pl.when(j == tiles_per_core - 1)
    def _finalize():
        # Per-core partial sum of loglik; sign / 1/N applied outside the kernel.
        o_ref[...] = jnp.broadcast_to(jnp.sum(acc_ref[...]), o_ref.shape)


def wrap_loss(xt, w, b, t, e, *, tile_n=8192, loss_aggregation="mean"):
    """WrapLoss.forward for an exponential-hazard survival model.

    xt : [D, N]  design matrix stored features-first (X^T) — avoids any
                 transpose/pad HBM pass before the kernel.  May be bf16/f16.
    w  : [D, 1] or [D]
    b  : scalar (any shape with one element)
    t  : [N, 1] or [N]   survival times
    e  : [N, 1] or [N]   event indicators
    Returns the scalar mean (or sum) negative log-likelihood.
    """
    d, n = xt.shape
    # Only shrink the tile when the whole batch is smaller than one tile;
    # large N keeps the large default tile.
    tile_n = max(_LANES, min(_round_up(tile_n, _LANES), _round_up(n, _LANES)))
    n_tiles = pl.cdiv(n, tile_n)
    tiles_per_core = pl.cdiv(n_tiles, _NUM_CORES)

    # Free reshapes of contiguous arrays (no HBM traffic).
    t_row = t.reshape(1, n)
    e_row = e.reshape(1, n)
    w_col = w.reshape(d, 1)
    b_smem = jnp.asarray(b, jnp.float32).reshape(1, 1)

    # Tiles past the end (odd tile count / core split) are clamped onto the
    # last real tile; their contribution is zeroed by the in-kernel mask.
    def col(c, j):
        return jnp.minimum(c * tiles_per_core + j, n_tiles - 1)

    kernel = functools.partial(
        _wraploss_kernel, n=n, tile_n=tile_n, tiles_per_core=tiles_per_core)

    bytes_accessed = int(xt.size * xt.dtype.itemsize
                         + t_row.size * t_row.dtype.itemsize
                         + e_row.size * e_row.dtype.itemsize
                         + w_col.size * 4 + _NUM_CORES * _LANES * 4 + 4)
    cost = pl.CostEstimate(flops=int(n * (2 * d + 6)),
                           transcendentals=int(n),
                           bytes_accessed=bytes_accessed)

    # VMEM budget: double-buffered X tile + sublane-padded (x8) T/E tiles
    # + accumulator + small w/b/out blocks, plus generous margin.
    vmem_need = (2 * d * tile_n * xt.dtype.itemsize          # X^T tiles
                 + 2 * 2 * 8 * tile_n * 4                    # T, E tiles (padded)
                 + 8 * tile_n * 4                            # accumulator (padded)
                 + 4 * 8 * _LANES * 4)                       # w + out blocks
    vmem_limit = max(int(vmem_need) + (8 << 20), 16 << 20)

    partials = pl.pallas_call(
        kernel,
        out_shape=jax.ShapeDtypeStruct((1, _NUM_CORES * _LANES), jnp.float32),
        grid=(_NUM_CORES, tiles_per_core),
        in_specs=[
            pl.BlockSpec((1, 1), lambda c, j: (0, 0),
                         memory_space=pltpu.MemorySpace.SMEM),       # b
            pl.BlockSpec((d, tile_n), lambda c, j: (0, col(c, j))),  # X^T tile
            pl.BlockSpec((d, 1), lambda c, j: (0, 0)),               # w
            pl.BlockSpec((1, tile_n), lambda c, j: (0, col(c, j))),  # T row
            pl.BlockSpec((1, tile_n), lambda c, j: (0, col(c, j))),  # E row
        ],
        out_specs=pl.BlockSpec((1, _LANES), lambda c, j: (0, c)),    # per-core block
        scratch_shapes=[pltpu.VMEM((1, tile_n), jnp.float32)],
        compiler_params=pltpu.CompilerParams(
            dimension_semantics=("parallel", "arbitrary"),
            vmem_limit_bytes=vmem_limit),
        cost_estimate=cost,
    )(b_smem, xt, w_col, t_row, e_row)

    # Combine the per-core partial sums outside the kernel (no cross-core race).
    total_loglik = jnp.sum(partials.reshape(_NUM_CORES, _LANES)[:, 0])
    if loss_aggregation == "mean":
        # n is a Python int (shape-derived); batch-size changes recompile anyway.
        return -total_loglik / n
    elif loss_aggregation == "sum":
        return -total_loglik
    else:
        raise ValueError("loss_aggregation must be 'mean' or 'sum'")


def wrap_loss_ref(xt, w, b, t, e):
    """Pure-JAX reference for correctness check (mean aggregation)."""
    z = xt.T @ w.reshape(-1, 1) + jnp.asarray(b, jnp.float32).reshape(1, 1)
    rate = jnp.exp(z)
    loglik = e.reshape(-1, 1) * z - rate * t.reshape(-1, 1)
    return -jnp.mean(loglik)


if __name__ == "__main__":
    key = jax.random.PRNGKey(0)
    k_x, k_w, k_b, k_t, k_e = jax.random.split(key, 5)

    # Small deterministic example; N deliberately not a multiple of 128 to
    # exercise the in-kernel ragged-tail mask.  Features-first layout [D, N].
    N, D = 500, 32
    xt = jax.random.normal(k_x, (D, N), dtype=jnp.float32)
    w = 0.1 * jax.random.normal(k_w, (D, 1), dtype=jnp.float32)
    b = 0.05 * jax.random.normal(k_b, (1, 1), dtype=jnp.float32)
    t = jax.random.uniform(k_t, (N, 1), dtype=jnp.float32, minval=0.1, maxval=3.0)
    e = (jax.random.uniform(k_e, (N, 1)) > 0.3).astype(jnp.float32)

    ref = wrap_loss_ref(xt, w, b, t, e)

    # Default (large-tile) configuration.
    loss = wrap_loss(xt, w, b, t, e)
    jax.block_until_ready(loss)
    assert jnp.allclose(loss, ref, rtol=1e-5, atol=1e-5), (loss, ref)

    # Correctness-only check of the multi-tile / odd-tile-count / ragged path
    # (a tiny tile is NOT a performance configuration).
    loss_small = wrap_loss(xt, w, b, t, e, tile_n=128)
    jax.block_until_ready(loss_small)
    assert jnp.allclose(loss_small, ref, rtol=1e-5, atol=1e-5), (loss_small, ref)

    # 'sum' aggregation path.
    loss_sum = wrap_loss(xt, w, b, t, e, loss_aggregation="sum")
    jax.block_until_ready(loss_sum)
    assert jnp.allclose(loss_sum, ref * N, rtol=1e-5, atol=1e-4), (loss_sum, ref * N)

    print("KERNEL_OK")
</pallas_src>

<mosaic_0001>
module attributes {stable_mosaic.version = 11 : i64} {
  func.func @_wraploss_kernel(%arg0: i32, %arg1: i32, %arg2: memref<1x1xf32, #tpu.memory_space<smem>>, %arg3: memref<32x512xf32, #tpu.memory_space<vmem>>, %arg4: memref<32x1xf32, #tpu.memory_space<vmem>>, %arg5: memref<1x512xf32, #tpu.memory_space<vmem>>, %arg6: memref<1x512xf32, #tpu.memory_space<vmem>>, %arg7: memref<1x128xf32, #tpu.memory_space<vmem>>, %arg8: memref<1x512xf32, #tpu.memory_space<vmem>>) attributes {dimension_semantics = [#tpu.dimension_semantics<parallel>, #tpu.dimension_semantics<arbitrary>], iteration_bounds = array<i64: 2, 1>, scalar_prefetch = 0 : i64, scratch_operands = 1 : i64, tpu.core_type = #tpu.core_type<tc>, window_params = [{transform_indices = @transform_0, window_bounds = array<i64: 1, 1>}, {transform_indices = @transform_1, window_bounds = array<i64: 32, 512>}, {pipeline_mode = #tpu.pipeline_mode<synchronous>, transform_indices = @transform_2, window_bounds = array<i64: 32, 1>}, {transform_indices = @transform_3, window_bounds = array<i64: 1, 512>}, {transform_indices = @transform_4, window_bounds = array<i64: 1, 512>}, {transform_indices = @transform_5, window_bounds = array<i64: 1, 128>}]} {
    %c0_i32 = arith.constant 0 : i32
    %0 = arith.cmpi eq, %arg1, %c0_i32 : i32
    %1 = arith.extui %0 : i1 to i32
    %c0_i32_0 = arith.constant 0 : i32
    %2 = arith.cmpi ne, %1, %c0_i32_0 : i32
    scf.if %2 {
      %cst_17 = arith.constant 0.000000e+00 : f32
      %34 = vector.broadcast %cst_17 : f32 to vector<1x512xf32>
      %c0_18 = arith.constant 0 : index
      %c0_19 = arith.constant 0 : index
      %35 = vector.load %arg8[%c0_18, %c0_19] : memref<1x512xf32, #tpu.memory_space<vmem>>, vector<1x512xf32>
      tpu.vector_store %arg8[%c0_18, %c0_19], %34 {strides = array<i32>} : memref<1x512xf32, #tpu.memory_space<vmem>>, vector<1x512xf32>,
    } else {
    }
    %c0 = arith.constant 0 : index
    %c0_1 = arith.constant 0 : index
    %3 = vector.load %arg3[%c0, %c0_1] : memref<32x512xf32, #tpu.memory_space<vmem>>, vector<32x512xf32>
    %c0_2 = arith.constant 0 : index
    %c0_3 = arith.constant 0 : index
    %4 = vector.load %arg4[%c0_2, %c0_3] : memref<32x1xf32, #tpu.memory_space<vmem>>, vector<32x1xf32>
    %5 = vector.broadcast %4 : vector<32x1xf32> to vector<32x512xf32>
    %6 = arith.mulf %5, %3 : vector<32x512xf32>
    %cst = arith.constant dense<0.000000e+00> : vector<512xf32>
    %7 = vector.multi_reduction <add>, %6, %cst [0] : vector<32x512xf32> to vector<512xf32>
    %8 = vector.shape_cast %7 : vector<512xf32> to vector<1x512xf32>
    %c0_4 = arith.constant 0 : index
    %c0_5 = arith.constant 0 : index
    %9 = memref.load %arg2[%c0_4, %c0_5] : memref<1x1xf32, #tpu.memory_space<smem>>
    %10 = vector.broadcast %9 : f32 to vector<1x512xf32>
    %11 = arith.addf %8, %10 : vector<1x512xf32>
    %12 = math.exp %11 : vector<1x512xf32>
    %c0_6 = arith.constant 0 : index
    %c0_7 = arith.constant 0 : index
    %13 = vector.load %arg5[%c0_6, %c0_7] : memref<1x512xf32, #tpu.memory_space<vmem>>, vector<1x512xf32>
    %c0_8 = arith.constant 0 : index
    %c0_9 = arith.constant 0 : index
    %14 = vector.load %arg6[%c0_8, %c0_9] : memref<1x512xf32, #tpu.memory_space<vmem>>, vector<1x512xf32>
    %15 = arith.mulf %14, %11 : vector<1x512xf32>
    %16 = arith.mulf %12, %13 : vector<1x512xf32>
    %17 = arith.subf %15, %16 : vector<1x512xf32>
    %c1_i32 = arith.constant 1 : i32
    %18 = arith.muli %arg0, %c1_i32 : i32
    %19 = arith.addi %18, %arg1 : i32
    %c512_i32 = arith.constant 512 : i32
    %20 = arith.muli %19, %c512_i32 : i32
    %21 = tpu.iota {dimensions = array<i32: 1>} : vector<1x512xi32>
    %22 = vector.broadcast %20 : i32 to vector<1x512xi32>
    %23 = arith.addi %22, %21 : vector<1x512xi32>
    %c500_i32 = arith.constant 500 : i32
    %24 = vector.broadcast %c500_i32 : i32 to vector<1x512xi32>
    %25 = arith.cmpi slt, %23, %24 : vector<1x512xi32>
    %c0_10 = arith.constant 0 : index
    %c0_11 = arith.constant 0 : index
    %26 = vector.load %arg8[%c0_10, %c0_11] : memref<1x512xf32, #tpu.memory_space<vmem>>, vector<1x512xf32>
    %cst_12 = arith.constant 0.000000e+00 : f32
    %27 = vector.broadcast %cst_12 : f32 to vector<1x512xf32>
    %28 = arith.select %25, %17, %27 : vector<1x512xi1>, vector<1x512xf32>
    %29 = arith.addf %26, %28 : vector<1x512xf32>
    %c0_13 = arith.constant 0 : index
    %c0_14 = arith.constant 0 : index
    %30 = vector.load %arg8[%c0_13, %c0_14] : memref<1x512xf32, #tpu.memory_space<vmem>>, vector<1x512xf32>
    tpu.vector_store %arg8[%c0_13, %c0_14], %29 {strides = array<i32>} : memref<1x512xf32, #tpu.memory_space<vmem>>, vector<1x512xf32>,
    %c0_i32_15 = arith.constant 0 : i32
    %31 = arith.cmpi eq, %arg1, %c0_i32_15 : i32
    %32 = arith.extui %31 : i1 to i32
    %c0_i32_16 = arith.constant 0 : i32
    %33 = arith.cmpi ne, %32, %c0_i32_16 : i32
    scf.if %33 {
      %c0_17 = arith.constant 0 : index
      %c0_18 = arith.constant 0 : index
      %34 = vector.load %arg8[%c0_17, %c0_18] : memref<1x512xf32, #tpu.memory_space<vmem>>, vector<1x512xf32>
      %35 = vector.shape_cast %34 : vector<1x512xf32> to vector<1x1x512xf32>
      %cst_19 = arith.constant dense<0.000000e+00> : vector<1xf32>
      %36 = vector.multi_reduction <add>, %35, %cst_19 [1, 2] : vector<1x1x512xf32> to vector<1xf32>
      %37 = vector.shape_cast %36 : vector<1xf32> to vector<1x1x1xf32>
      %38 = vector.extract %37[0, 0, 0] : f32 from vector<1x1x1xf32>
      %39 = vector.broadcast %38 : f32 to vector<1x128xf32>
      %c0_20 = arith.constant 0 : index
      %c0_21 = arith.constant 0 : index
      %40 = vector.load %arg7[%c0_20, %c0_21] : memref<1x128xf32, #tpu.memory_space<vmem>>, vector<1x128xf32>
      tpu.vector_store %arg7[%c0_20, %c0_21], %39 {strides = array<i32>} : memref<1x128xf32, #tpu.memory_space<vmem>>, vector<1x128xf32>,
    } else {
    }
    return
  }
  func.func @transform_0(%arg0: i32, %arg1: i32) -> (i32, i32) {
    %c0_i32 = arith.constant 0 : i32
    %c0_i32_0 = arith.constant 0 : i32
    %c0_i32_1 = arith.constant 0 : i32
    return %c0_i32, %c0_i32_0 : i32, i32
  }
  func.func @transform_1(%arg0: i32, %arg1: i32) -> (i32, i32) {
    %c1_i32 = arith.constant 1 : i32
    %0 = arith.muli %arg0, %c1_i32 : i32
    %1 = arith.addi %0, %arg1 : i32
    %c0_i32 = arith.constant 0 : i32
    %2 = arith.minsi %1, %c0_i32 : i32
    %c0_i32_0 = arith.constant 0 : i32
    %c0_i32_1 = arith.constant 0 : i32
    return %c0_i32_0, %2 : i32, i32
  }
  func.func @transform_2(%arg0: i32, %arg1: i32) -> (i32, i32) {
    %c0_i32 = arith.constant 0 : i32
    %c0_i32_0 = arith.constant 0 : i32
    %c0_i32_1 = arith.constant 0 : i32
    return %c0_i32, %c0_i32_0 : i32, i32
  }
  func.func @transform_3(%arg0: i32, %arg1: i32) -> (i32, i32) {
    %c1_i32 = arith.constant 1 : i32
    %0 = arith.muli %arg0, %c1_i32 : i32
    %1 = arith.addi %0, %arg1 : i32
    %c0_i32 = arith.constant 0 : i32
    %2 = arith.minsi %1, %c0_i32 : i32
    %c0_i32_0 = arith.constant 0 : i32
    %c0_i32_1 = arith.constant 0 : i32
    return %c0_i32_0, %2 : i32, i32
  }
  func.func @transform_4(%arg0: i32, %arg1: i32) -> (i32, i32) {
    %c1_i32 = arith.constant 1 : i32
    %0 = arith.muli %arg0, %c1_i32 : i32
    %1 = arith.addi %0, %arg1 : i32
    %c0_i32 = arith.constant 0 : i32
    %2 = arith.minsi %1, %c0_i32 : i32
    %c0_i32_0 = arith.constant 0 : i32
    %c0_i32_1 = arith.constant 0 : i32
    return %c0_i32_0, %2 : i32, i32
  }
  func.func @transform_5(%arg0: i32, %arg1: i32) -> (i32, i32) {
    %c0_i32 = arith.constant 0 : i32
    %c0_i32_0 = arith.constant 0 : i32
    return %c0_i32, %arg0 : i32, i32
  }
}

</mosaic_0001>

<llo_original>
// kernel: tpu_custom_call.1
$region0: #{tpu_custom_call.1}
  #allocation0 [shape = 'u32[]', space=smem, size = 0x4, offset = 0x4, fixed_abs, tag = 'smem constant byte address 0x4 - core index']
  #allocation1 [shape = 'u32[72,128]{1,0:T(1,128)}', space=vmem, size = 0x9000, scoped, tag = 'internal scratch']
  #allocation2 [shape = 'f32[1,512]{1,0:T(1,128)}', space=vmem, size = 0x800, scoped, tag = 'scratch operand']
  #allocation3 [shape = 'f32[1,1]{1,0:T(1,128)S(6)}', space=smem, size = 0x200, scoped, tag = 'scoped memory for tpu_custom_call.1']
  %s0 = inlined_call_operand.<no memory space> [shape: f32[1,1], index: 0, kind: input, shape index: {}]
  %s1 = inlined_call_operand.hbm [shape: f32[32,500], index: 1, kind: input, shape index: {}]
  %s2 = inlined_call_operand.vmem [shape: f32[32,1], index: 2, kind: input, shape index: {}]
  %s3 = inlined_call_operand.vmem [shape: f32[1,500], index: 3, kind: input, shape index: {}]
  %s4 = inlined_call_operand.vmem [shape: f32[1,500], index: 4, kind: input, shape index: {}]
  %s5 = inlined_call_operand.hbm [shape: f32[1,256], index: 5, kind: output, shape index: {}]
  %s6 = sld [smem:[#allocation0]]
  $region65: #{tpu_custom_call.1} parent=0
    _
  %s8 = ssub.s32 1, %s6
  %s9 = scalar_select 0, %s8, %s6
  %10 = sst [smem:[#allocation3]] %s0
  $region1: #{tpu_custom_call.1} parent=0
    #allocation4 [shape = 'u8[131072]{0}', space=vmem, size = 0x20000, scoped, tag = 'input window, operand 1']
    #allocation5 [shape = 's32[2]{0}', space=sflag, size = 0x8, scoped, tag = 'scoped memory for tpu_custom_call.1']
    #allocation6 [shape = 's32[2]{0}', space=sflag, size = 0x8, scoped, tag = 'scoped memory for tpu_custom_call.1']
    #allocation7 [shape = 'u8[1024]{0}', space=vmem, size = 0x400, scoped, tag = 'output window, operand 0']
    %11 = vsyncpa [#allocation5], 0
    %s12 = scalar_lea.sflag [#allocation5], 1
    %13 = vsyncpa %s12, 0
    %14 = vsyncpa [#allocation6], 0
    %s15 = scalar_lea.sflag [#allocation6], 1
    %16 = vsyncpa %s15, 0
    loop: start=0, step=1, limit=4
    $region2: #{tpu_custom_call.1} parent=1 // loop_pre_header
      _
    $region3: #{tpu_custom_call.1} parent=1 // loop_header
      %s18 = sphi 0, %s22
      %p19 = scmp.ge.s32.totalorder %s18, 4
      %s25 = sphi 0, %s37
      %s26 = sphi 0, %s33
      %s27 = sphi 0, %s25
      %s28 = sphi 0, %s26
      %s29 = sphi 0, %s27
      %s30 = sphi 0, %s28
      %s38 = sphi 0, %s38
      %s40 = sphi 0, %s38
      %s41 = sphi 0, %s40
      %s55 = sphi 0, %s41
      %s67 = sphi 0, %s69
      %s70 = sphi 0, %s67
      %s71 = sphi 0, %s70
      %s87 = sphi 0, %s71
      %s91 = sphi 0, %s91
      %s93 = sphi 0, %s91
      %s94 = sphi 0, %s93
      %s108 = sphi 0, %s94
      %s120 = sphi 0, %s122
      %s123 = sphi 0, %s120
      %s124 = sphi 0, %s123
      %s140 = sphi 0, %s124
      %s152 = sphi 0, %s154
      %s155 = sphi 0, %s152
      %s156 = sphi 0, %s155
      %s172 = sphi 0, %s156
      %s178 = sphi 0, %s180
      %s181 = sphi 0, %s178
      %s182 = sphi 0, %s181
      %s198 = sphi 0, %s182
    $region4: #{tpu_custom_call.1} parent=1 // loop_header_branch
      %21 = sbr.rel (%p19) target = $region8
    $region5: #{tpu_custom_call.1} parent=1 // loop_body
      %s23 = ssub.s32 %s18, 1
      %s24 = ssub.s32 %s18, 2
      %s31 = sadd.s32 1, %s26
      %p32 = scmp.ge.s32.totalorder %s31, 1
      %s33 = scalar_select %p32, 0, %s31
      %s34 = sadd.s32 1, %s25
      %s35 = scalar_select %p32, %s34, %s25
      %p36 = scmp.ge.s32.totalorder %s35, 2
      %s37 = scalar_select %p36, 0, %s35
      %s39 = sadd.s32 %s38, 1
      %p42 = scmp.eq.s32.totalorder %s18, 1
      %p43 = scmp.ne.s32.totalorder %s38, %s40
      %p44 = scmp.eq.s32.totalorder %s18, 0
      %p45 = por %p43, %p44
      %p46 = scmp.ne.s32.totalorder %s38, %s40
      %p47 = scmp.eq.s32.totalorder %s23, 1
      %p48 = por %p46, %p47
      %p49 = scmp.ne.s32.totalorder %s40, %s41
      %p50 = scmp.eq.s32.totalorder %s23, 0
      %p51 = por %p49, %p50
      %p52 = scmp.ne.s32.totalorder %s40, %s41
      %p53 = scmp.eq.s32.totalorder %s24, 1
      %p54 = por %p52, %p53
      %p56 = scmp.ne.s32.totalorder %s41, %s55
      %p57 = scmp.eq.s32.totalorder %s24, 0
      %p58 = por %p56, %p57
      %s59 = sadd.s32 %s25, %s26
      %p60 = scmp.lt.s32.totalorder %s59, 0
      %s61 = scalar_select %p60, %s59, 0
      %s62 = sadd.s32 %s37, %s33
      %p63 = scmp.lt.s32.totalorder %s62, 0
      %s64 = scalar_select %p63, %s62, 0
      %s65 = ssub.s32 %s61, %s64
      %p66 = scmp.eq.s32.totalorder %s65, 0
      %s68 = sadd.s32 %s67, 1
      %s69 = scalar_select %p66, %s67, %s68
      %p72 = pneg %p66
      %p73 = scmp.eq.s32.totalorder %s18, 1
      %p74 = por %p72, %p73
      %p75 = scmp.ne.s32.totalorder %s67, %s70
      %p76 = scmp.eq.s32.totalorder %s18, 0
      %p77 = por %p75, %p76
      %p78 = scmp.ne.s32.totalorder %s67, %s70
      %p79 = scmp.eq.s32.totalorder %s23, 1
      %p80 = por %p78, %p79
      %p81 = scmp.ne.s32.totalorder %s70, %s71
      %p82 = scmp.eq.s32.totalorder %s23, 0
      %p83 = por %p81, %p82
      %p84 = scmp.ne.s32.totalorder %s70, %s71
      %p85 = scmp.eq.s32.totalorder %s24, 1
      %p86 = por %p84, %p85
      %p88 = scmp.ne.s32.totalorder %s71, %s87
      %p89 = scmp.eq.s32.totalorder %s24, 0
      %p90 = por %p88, %p89
      %s92 = sadd.s32 %s91, 1
      %p95 = scmp.eq.s32.totalorder %s18, 1
      %p96 = scmp.ne.s32.totalorder %s91, %s93
      %p97 = scmp.eq.s32.totalorder %s18, 0
      %p98 = por %p96, %p97
      %p99 = scmp.ne.s32.totalorder %s91, %s93
      %p100 = scmp.eq.s32.totalorder %s23, 1
      %p101 = por %p99, %p100
      %p102 = scmp.ne.s32.totalorder %s93, %s94
      %p103 = scmp.eq.s32.totalorder %s23, 0
      %p104 = por %p102, %p103
      %p105 = scmp.ne.s32.totalorder %s93, %s94
      %p106 = scmp.eq.s32.totalorder %s24, 1
      %p107 = por %p105, %p106
      %p109 = scmp.ne.s32.totalorder %s94, %s108
      %p110 = scmp.eq.s32.totalorder %s24, 0
      %p111 = por %p109, %p110
      %s112 = sadd.s32 %s25, %s26
      %p113 = scmp.lt.s32.totalorder %s112, 0
      %s114 = scalar_select %p113, %s112, 0
      %s115 = sadd.s32 %s37, %s33
      %p116 = scmp.lt.s32.totalorder %s115, 0
      %s117 = scalar_select %p116, %s115, 0
      %s118 = ssub.s32 %s114, %s117
      %p119 = scmp.eq.s32.totalorder %s118, 0
      %s121 = sadd.s32 %s120, 1
      %s122 = scalar_select %p119, %s120, %s121
      %p125 = pneg %p119
      %p126 = scmp.eq.s32.totalorder %s18, 1
      %p127 = por %p125, %p126
      %p128 = scmp.ne.s32.totalorder %s120, %s123
      %p129 = scmp.eq.s32.totalorder %s18, 0
      %p130 = por %p128, %p129
      %p131 = scmp.ne.s32.totalorder %s120, %s123
      %p132 = scmp.eq.s32.totalorder %s23, 1
      %p133 = por %p131, %p132
      %p134 = scmp.ne.s32.totalorder %s123, %s124
      %p135 = scmp.eq.s32.totalorder %s23, 0
      %p136 = por %p134, %p135
      %p137 = scmp.ne.s32.totalorder %s123, %s124
      %p138 = scmp.eq.s32.totalorder %s24, 1
      %p139 = por %p137, %p138
      %p141 = scmp.ne.s32.totalorder %s124, %s140
      %p142 = scmp.eq.s32.totalorder %s24, 0
      %p143 = por %p141, %p142
      %s144 = sadd.s32 %s25, %s26
      %p145 = scmp.lt.s32.totalorder %s144, 0
      %s146 = scalar_select %p145, %s144, 0
      %s147 = sadd.s32 %s37, %s33
      %p148 = scmp.lt.s32.totalorder %s147, 0
      %s149 = scalar_select %p148, %s147, 0
      %s150 = ssub.s32 %s146, %s149
      %p151 = scmp.eq.s32.totalorder %s150, 0
      %s153 = sadd.s32 %s152, 1
      %s154 = scalar_select %p151, %s152, %s153
      %p157 = pneg %p151
      %p158 = scmp.eq.s32.totalorder %s18, 1
      %p159 = por %p157, %p158
      %p160 = scmp.ne.s32.totalorder %s152, %s155
      %p161 = scmp.eq.s32.totalorder %s18, 0
      %p162 = por %p160, %p161
      %p163 = scmp.ne.s32.totalorder %s152, %s155
      %p164 = scmp.eq.s32.totalorder %s23, 1
      %p165 = por %p163, %p164
      %p166 = scmp.ne.s32.totalorder %s155, %s156
      %p167 = scmp.eq.s32.totalorder %s23, 0
      %p168 = por %p166, %p167
      %p169 = scmp.ne.s32.totalorder %s155, %s156
      %p170 = scmp.eq.s32.totalorder %s24, 1
      %p171 = por %p169, %p170
      %p173 = scmp.ne.s32.totalorder %s156, %s172
      %p174 = scmp.eq.s32.totalorder %s24, 0
      %p175 = por %p173, %p174
      %s176 = ssub.s32 %s25, %s37
      %p177 = scmp.eq.s32.totalorder %s176, 0
      %s179 = sadd.s32 %s178, 1
      %s180 = scalar_select %p177, %s178, %s179
      %p183 = pneg %p177
      %p184 = scmp.eq.s32.totalorder %s18, 1
      %p185 = por %p183, %p184
      %p186 = scmp.ne.s32.totalorder %s178, %s181
      %p187 = scmp.eq.s32.totalorder %s18, 0
      %p188 = por %p186, %p187
      %p189 = scmp.ne.s32.totalorder %s178, %s181
      %p190 = scmp.eq.s32.totalorder %s23, 1
      %p191 = por %p189, %p190
      %p192 = scmp.ne.s32.totalorder %s181, %s182
      %p193 = scmp.eq.s32.totalorder %s23, 0
      %p194 = por %p192, %p193
      %p195 = scmp.ne.s32.totalorder %s181, %s182
      %p196 = scmp.eq.s32.totalorder %s24, 1
      %p197 = por %p195, %p196
      %p199 = scmp.ne.s32.totalorder %s182, %s198
      %p200 = scmp.eq.s32.totalorder %s24, 0
      %p201 = por %p199, %p200
      %p202 = scmp.le.s32.totalorder 1, %s18
      %p203 = scmp.lt.s32.totalorder %s18, 3
      %p204 = pnand %p202, %p203
      %p205 = pneg %p204
      // Predicated region
      $region9: #{tpu_custom_call.1} parent=5 // pred_check
        _
      $region10: #{tpu_custom_call.1} parent=5 // pred_check_branch
        %207 = sbr.rel (%p204) target = $region12
      $region11: #{tpu_custom_call.1} parent=5 // pred_region
        %s208 = ssub.s32 %s18, 1
        // Predicated region
        $region13: #{tpu_custom_call.1} parent=11 // pred_check
          %p209 = pneg %p51
        $region14: #{tpu_custom_call.1} parent=11 // pred_check_branch
          %211 = sbr.rel (%p209) target = $region16
        $region15: #{tpu_custom_call.1} parent=11 // pred_region
          _
        $region16: #{tpu_custom_call.1} parent=11 // pred_fallthru
          _
        // Predicated region
        $region17: #{tpu_custom_call.1} parent=11 // pred_check
          %p212 = pneg %p104
        $region18: #{tpu_custom_call.1} parent=11 // pred_check_branch
          %214 = sbr.rel (%p212) target = $region20
        $region19: #{tpu_custom_call.1} parent=11 // pred_region
          _
        $region20: #{tpu_custom_call.1} parent=11 // pred_fallthru
          _
      $region12: #{tpu_custom_call.1} parent=5 // pred_fallthru
        _
      %p215 = scmp.lt.s32.totalorder %s18, 2
      // Predicated region
      $region21: #{tpu_custom_call.1} parent=5 // pred_check
        %p216 = pneg %p215
      $region22: #{tpu_custom_call.1} parent=5 // pred_check_branch
        %218 = sbr.rel (%p216) target = $region24
      $region23: #{tpu_custom_call.1} parent=5 // pred_region
        // Predicated region
        $region25: #{tpu_custom_call.1} parent=23 // pred_check
          %p219 = pneg %p77
        $region26: #{tpu_custom_call.1} parent=23 // pred_check_branch
          %221 = sbr.rel (%p219) target = $region28
        $region27: #{tpu_custom_call.1} parent=23 // pred_region
          %s222 = sand.u32 %s67, 1
          %s223 = scalar_lea.sflag [#allocation5], %s222
          %s224 = sand.u32 %s67, 1
          %s225 = smul.addr %s224, 128
          %s226 = scalar_lea.vmem [#allocation4], %s225
          %s227 = sadd.s32 %s25, %s26
          %p228 = scmp.lt.s32.totalorder %s227, 0
          %s229 = scalar_select %p228, %s227, 0
          %s230 = smul.u32 4, %s229
          %232 = vsyncadd %s223, 0
          %s233 = smul.addr %s230, 8
          %s234 = scalar_lea.hbm %s1, %s233
          %s235 = sshll.u32 %s234, 4
          %s236 = int_to_ptr.hbm [resolvable:$true] %s235
          %s237 = sshll.u32 %s226, 4
          %s238 = int_to_ptr.vmem [resolvable:$true] %s237
          %243 = dma.hbm_to_vmem [thread:$0]  %s236, 2048, %s238, %s223, 512, 512, 32
        $region28: #{tpu_custom_call.1} parent=23 // pred_fallthru
          _
        // Predicated region
        $region29: #{tpu_custom_call.1} parent=23 // pred_check
          %p244 = pneg %p130
        $region30: #{tpu_custom_call.1} parent=23 // pred_check_branch
          %246 = sbr.rel (%p244) target = $region32
        $region31: #{tpu_custom_call.1} parent=23 // pred_region
          %s247 = sadd.s32 %s25, %s26
          %p248 = scmp.lt.s32.totalorder %s247, 0
          %s249 = scalar_select %p248, %s247, 0
          %s250 = smul.u32 4, %s249
          %p251 = scmp.lt.s32.totalorder %s250, 3
          %s252 = scalar_select %p251, %s250, 3
          %s253 = scalar_lea.vmem %s3, %s252
          %s254 = sadd.s32 %s25, %s26
          %p255 = scmp.lt.s32.totalorder %s254, 0
          %s256 = scalar_select %p255, %s254, 0
          %s257 = smul.u32 4, %s256
        $region32: #{tpu_custom_call.1} parent=23 // pred_fallthru
          _
        // Predicated region
        $region33: #{tpu_custom_call.1} parent=23 // pred_check
          %p258 = pneg %p162
        $region34: #{tpu_custom_call.1} parent=23 // pred_check_branch
          %260 = sbr.rel (%p258) target = $region36
        $region35: #{tpu_custom_call.1} parent=23 // pred_region
          %s261 = sadd.s32 %s25, %s26
          %p262 = scmp.lt.s32.totalorder %s261, 0
          %s263 = scalar_select %p262, %s261, 0
          %s264 = smul.u32 4, %s263
          %p265 = scmp.lt.s32.totalorder %s264, 3
          %s266 = scalar_select %p265, %s264, 3
          %s267 = scalar_lea.vmem %s4, %s266
          %s268 = sadd.s32 %s25, %s26
          %p269 = scmp.lt.s32.totalorder %s268, 0
          %s270 = scalar_select %p269, %s268, 0
          %s271 = smul.u32 4, %s270
        $region36: #{tpu_custom_call.1} parent=23 // pred_fallthru
          _
      $region24: #{tpu_custom_call.1} parent=5 // pred_fallthru
        _
      %p272 = scmp.le.s32.totalorder 1, %s18
      %p273 = scmp.lt.s32.totalorder %s18, 3
      %p274 = pnand %p272, %p273
      %p275 = pneg %p274
      // Predicated region
      $region37: #{tpu_custom_call.1} parent=5 // pred_check
        _
      $region38: #{tpu_custom_call.1} parent=5 // pred_check_branch
        %277 = sbr.rel (%p274) target = $region40
      $region39: #{tpu_custom_call.1} parent=5 // pred_region
        %s278 = ssub.s32 %s18, 1
        %s279 = sand.u32 %s70, 1
        %s280 = scalar_lea.sflag [#allocation5], %s279
        %s281 = sand.u32 %s70, 1
        %s282 = smul.addr %s281, 128
        %s283 = scalar_lea.vmem [#allocation4], %s282
        // Predicated region
        $region41: #{tpu_custom_call.1} parent=39 // pred_check
          %p284 = pneg %p83
        $region42: #{tpu_custom_call.1} parent=39 // pred_check_branch
          %286 = sbr.rel (%p284) target = $region44
        $region43: #{tpu_custom_call.1} parent=39 // pred_region
          %288 = dma.done %s280, 2048
        $region44: #{tpu_custom_call.1} parent=39 // pred_fallthru
          _
        %p289 = pneg %p51
        %p290 = pneg %p48
        %s291 = sand.u32 %s70, 1
        %s292 = scalar_lea.sflag [#allocation5], %s291
        %s293 = sand.u32 %s70, 1
        %s294 = smul.addr %s293, 128
        %s295 = scalar_lea.vmem [#allocation4], %s294
        %p296 = pneg %p83
        %p297 = pneg %p80
        %p298 = pneg %p104
        %p299 = pneg %p101
        %s300 = sadd.s32 %s27, %s28
        %p301 = scmp.lt.s32.totalorder %s300, 0
        %s302 = scalar_select %p301, %s300, 0
        %s303 = smul.u32 4, %s302
        %p304 = scmp.lt.s32.totalorder %s303, 3
        %s305 = scalar_select %p304, %s303, 3
        %s306 = scalar_lea.vmem %s3, %s305
        %p307 = pneg %p136
        %p308 = pneg %p133
        %s309 = sadd.s32 %s27, %s28
        %p310 = scmp.lt.s32.totalorder %s309, 0
        %s311 = scalar_select %p310, %s309, 0
        %s312 = smul.u32 4, %s311
        %p313 = scmp.lt.s32.totalorder %s312, 3
        %s314 = scalar_select %p313, %s312, 3
        %s315 = scalar_lea.vmem %s4, %s314
        %p316 = pneg %p168
        %p317 = pneg %p165
        %p318 = pneg %p194
        %p319 = pneg %p191
        %s320 = sand.u32 %s181, 1
        %s321 = scalar_lea.sflag [#allocation6], %s320
        %s322 = sand.u32 %s181, 1
        %s323 = scalar_lea.vmem [#allocation7], %s322
        %s324 = sadd.s32 %s27, %s28
        %p325 = scmp.lt.s32.totalorder %s324, 0
        %s326 = scalar_select %p325, %s324, 0
        %s327 = smul.u32 4, %s326
        %s328 = sadd.s32 %s27, %s28
        %p329 = scmp.lt.s32.totalorder %s328, 0
        %s330 = scalar_select %p329, %s328, 0
        %s331 = smul.u32 4, %s330
        %p332 = scmp.lt.s32.totalorder %s331, 3
        %s333 = scalar_select %p332, %s331, 3
        %s334 = scalar_lea.vmem %s3, %s333
        %s335 = sadd.s32 %s27, %s28
        %p336 = scmp.lt.s32.totalorder %s335, 0
        %s337 = scalar_select %p336, %s335, 0
        %s338 = smul.u32 4, %s337
        %s339 = sadd.s32 %s27, %s28
        %p340 = scmp.lt.s32.totalorder %s339, 0
        %s341 = scalar_select %p340, %s339, 0
        %s342 = smul.u32 4, %s341
        %p343 = scmp.lt.s32.totalorder %s342, 3
        %s344 = scalar_select %p343, %s342, 3
        %s345 = scalar_lea.vmem %s4, %s344
        %s346 = sadd.s32 %s27, %s28
        %p347 = scmp.lt.s32.totalorder %s346, 0
        %s348 = scalar_select %p347, %s346, 0
        %s349 = smul.u32 4, %s348
        %p350 = scmp.eq.s32.totalorder %s28, 0
        // Predicated region
        $region45: #{tpu_custom_call.1} parent=39 // pred_check
          %p351 = pneg %p350
        $region46: #{tpu_custom_call.1} parent=39 // pred_check_branch
          %353 = sbr.rel (%p351) target = $region48
        $region47: #{tpu_custom_call.1} parent=39 // pred_region
          %v354 = vlaneseq
          %vm355 = vcmp.ge.s32.totalorder %v354, 0
          %vm356 = vcmp.lt.s32.totalorder %v354, 512
          %vm357 = vmand %vm355, %vm356
          %358 = vst.msk [vmem:[#allocation2] sm:$0xf] %vm357, 0.0
        $region48: #{tpu_custom_call.1} parent=39 // pred_fallthru
          _
        %v359 = vld [vmem:[%s283] sm:$0xff]
        %v360 = vld [vmem:[%s283 + $0x8] sm:$0xff]
        %v361 = vld [vmem:[%s283 + $0x10] sm:$0xff]
        %v362 = vld [vmem:[%s283 + $0x18] sm:$0xff]
        %v363 = vld [vmem:[%s283 + $0x20] sm:$0xff]
        %v364 = vld [vmem:[%s283 + $0x28] sm:$0xff]
        %v365 = vld [vmem:[%s283 + $0x30] sm:$0xff]
        %v366 = vld [vmem:[%s283 + $0x38] sm:$0xff]
        %v367 = vld [vmem:[%s283 + $0x40] sm:$0xff]
        %v368 = vld [vmem:[%s283 + $0x48] sm:$0xff]
        %v369 = vld [vmem:[%s283 + $0x50] sm:$0xff]
        %v370 = vld [vmem:[%s283 + $0x58] sm:$0xff]
        %v371 = vld [vmem:[%s283 + $0x60] sm:$0xff]
        %v372 = vld [vmem:[%s283 + $0x68] sm:$0xff]
        %v373 = vld [vmem:[%s283 + $0x70] sm:$0xff]
        %v374 = vld [vmem:[%s283 + $0x78] sm:$0xff]
        %v375 = vld [vmem:[%s2] sm:$0xff]
        %v376 = vld [vmem:[%s2 + $0x8] sm:$0xff]
        %v377 = vld [vmem:[%s2 + $0x10] sm:$0xff]
        %v378 = vld [vmem:[%s2 + $0x18] sm:$0xff]
        %380 = vset.pattern.permute.xlu0 0
        %381 = vperm.xlu0 %380, %v375
        %v382 = vpop.permute.xlu0 %381
        %385 = vset.pattern.permute.xlu0 0
        %386 = vperm.xlu0 %385, %v376
        %v387 = vpop.permute.xlu0 %386
        %390 = vset.pattern.permute.xlu0 0
        %391 = vperm.xlu0 %390, %v377
        %v392 = vpop.permute.xlu0 %391
        %395 = vset.pattern.permute.xlu0 0
        %396 = vperm.xlu0 %395, %v378
        %v397 = vpop.permute.xlu0 %396
        %v399 = vmul.f32 %v382, %v359
        %v400 = vmul.f32 %v382, %v360
        %v401 = vmul.f32 %v382, %v361
        %v402 = vmul.f32 %v382, %v362
        %v403 = vmul.f32 %v387, %v363
        %v404 = vmul.f32 %v387, %v364
        %v405 = vmul.f32 %v387, %v365
        %v406 = vmul.f32 %v387, %v366
        %v407 = vmul.f32 %v392, %v367
        %v408 = vmul.f32 %v392, %v368
        %v409 = vmul.f32 %v392, %v369
        %v410 = vmul.f32 %v392, %v370
        %v411 = vmul.f32 %v397, %v371
        %v412 = vmul.f32 %v397, %v372
        %v413 = vmul.f32 %v397, %v373
        %v414 = vmul.f32 %v397, %v374
        %v415 = vadd.f32 %v399, %v403
        %v416 = vadd.f32 %v415, %v407
        %v417 = vadd.f32 %v416, %v411
        %v418 = vrot.slane %v417, 4
        %v419 = vadd.f32 %v417, %v418
        %v420 = vrot.slane %v419, 2
        %v421 = vadd.f32 %v419, %v420
        %v422 = vrot.slane %v421, 1
        %v423 = vadd.f32 %v421, %v422
        %v424 = vadd.f32 %v400, %v404
        %v425 = vadd.f32 %v424, %v408
        %v426 = vadd.f32 %v425, %v412
        %v427 = vrot.slane %v426, 4
        %v428 = vadd.f32 %v426, %v427
        %v429 = vrot.slane %v428, 2
        %v430 = vadd.f32 %v428, %v429
        %v431 = vrot.slane %v430, 1
        %v432 = vadd.f32 %v430, %v431
        %v433 = vadd.f32 %v401, %v405
        %v434 = vadd.f32 %v433, %v409
        %v435 = vadd.f32 %v434, %v413
        %v436 = vrot.slane %v435, 4
        %v437 = vadd.f32 %v435, %v436
        %v438 = vrot.slane %v437, 2
        %v439 = vadd.f32 %v437, %v438
        %v440 = vrot.slane %v439, 1
        %v441 = vadd.f32 %v439, %v440
        %v442 = vadd.f32 %v402, %v406
        %v443 = vadd.f32 %v442, %v410
        %v444 = vadd.f32 %v443, %v414
        %v445 = vrot.slane %v444, 4
        %v446 = vadd.f32 %v444, %v445
        %v447 = vrot.slane %v446, 2
        %v448 = vadd.f32 %v446, %v447
        %v449 = vrot.slane %v448, 1
        %v450 = vadd.f32 %v448, %v449
        %s451 = sld [smem:[#allocation3]]
        %v452 = vstv %s451
        %v453 = vadd.f32 %v423, %v452
        %v454 = vadd.f32 %v432, %v452
        %v455 = vadd.f32 %v441, %v452
        %v456 = vadd.f32 %v450, %v452
        %v457 = vmul.f32 %v453, 1.442695
        %v458 = vpow.pop %v457
        %v459 = vmul.f32 %v454, 1.442695
        %v460 = vpow.pop %v459
        %v461 = vmul.f32 %v455, 1.442695
        %v462 = vpow.pop %v461
        %v463 = vmul.f32 %v456, 1.442695
        %v464 = vpow.pop %v463
        %v465 = vld [vmem:[%s334] sm:$0xf]
        %v466 = vld [vmem:[%s345] sm:$0xf]
        %v471 = vrot.slane %v454, 7
        %v472 = vrot.slane %v455, 6
        %v473 = vrot.slane %v456, 5
        %vm474 = vcmask 1040384
        %v475 = vsel %vm474, %v453, %v471
        %vm476 = vcmask 1042434
        %v477 = vsel %vm476, %v472, %v473
        %vm478 = vcmask 1041408
        %v479 = vsel %vm478, %v475, %v477
        %v481 = vmul.f32 %v466, %v479
        %v483 = vperm.slane %v465, 0
        %v484 = vperm.slane %v465, 1
        %v485 = vperm.slane %v465, 2
        %v486 = vperm.slane %v465, 3
        %v491 = vmul.f32 %v458, %v483
        %v492 = vmul.f32 %v460, %v484
        %v493 = vmul.f32 %v462, %v485
        %v494 = vmul.f32 %v464, %v486
        %v499 = vrot.slane %v492, 7
        %v500 = vrot.slane %v493, 6
        %v501 = vrot.slane %v494, 5
        %v502 = vsel %vm474, %v491, %v499
        %v503 = vsel %vm476, %v500, %v501
        %v504 = vsel %vm478, %v502, %v503
        %v506 = vsub.f32 %v481, %v504
        %s507 = sadd.s32 %s27, %s28
        %s508 = smul.u32 %s507, 512
        %v509 = vlaneseq
        %v510 = vand.u32 %v509, 127
        %v511 = vadd.s32 %v510, 128
        %v512 = vadd.s32 %v510, 256
        %v513 = vadd.s32 %v510, 384
        %v514 = vstv %s508
        %v515 = vadd.s32 %v514, %v510
        %v516 = vadd.s32 %v514, %v511
        %v517 = vadd.s32 %v514, %v512
        %v518 = vadd.s32 %v514, %v513
        %vm519 = vcmp.lt.s32.totalorder %v515, 500
        %vm520 = vcmp.lt.s32.totalorder %v516, 500
        %vm521 = vcmp.lt.s32.totalorder %v517, 500
        %vm522 = vcmp.lt.s32.totalorder %v518, 500
        %v523 = vld [vmem:[#allocation2] sm:$0xf]
        %v525 = vperm.slane %v506, 0
        %v526 = vperm.slane %v506, 1
        %v527 = vperm.slane %v506, 2
        %v528 = vperm.slane %v506, 3
        %v533 = vsel %vm519, %v525, 0.0
        %v534 = vsel %vm520, %v526, 0.0
        %v535 = vsel %vm521, %v527, 0.0
        %v536 = vsel %vm522, %v528, 0.0
        %v541 = vrot.slane %v534, 7
        %v542 = vrot.slane %v535, 6
        %v543 = vrot.slane %v536, 5
        %v544 = vsel %vm474, %v533, %v541
        %v545 = vsel %vm476, %v542, %v543
        %v546 = vsel %vm478, %v544, %v545
        %v548 = vadd.f32 %v523, %v546
        %v549 = vlaneseq
        %vm550 = vcmp.ge.s32.totalorder %v549, 0
        %vm551 = vcmp.lt.s32.totalorder %v549, 512
        %vm552 = vmand %vm550, %vm551
        %553 = vst.msk [vmem:[#allocation2] sm:$0xf] %vm552, %v548
        // Predicated region
        $region49: #{tpu_custom_call.1} parent=39 // pred_check
          %p554 = pneg %p350
        $region50: #{tpu_custom_call.1} parent=39 // pred_check_branch
          %556 = sbr.rel (%p554) target = $region52
        $region51: #{tpu_custom_call.1} parent=39 // pred_region
          %v557 = vld [vmem:[#allocation2] sm:$0xf]
          %v559 = vperm.slane %v557, 0
          %v560 = vperm.slane %v557, 1
          %v561 = vperm.slane %v557, 2
          %v562 = vperm.slane %v557, 3
          %v567 = vsel %vm474, %v559, 0.0
          %v568 = vsel %vm474, %v560, 0.0
          %v569 = vadd.f32 %v567, %v568
          %v570 = vsel %vm474, %v561, 0.0
          %v571 = vadd.f32 %v569, %v570
          %v572 = vsel %vm474, %v562, 0.0
          %v573 = vadd.f32 %v571, %v572
          %574 = vadd.xlane.f32.xlu0 %v573
          %v575 = vpop.xlane.xlu0 %574
          %v576 = vrot.slane %v575, 4
          %v577 = vadd.f32 %v575, %v576
          %v578 = vrot.slane %v577, 2
          %v579 = vadd.f32 %v577, %v578
          %v580 = vrot.slane %v579, 1
          %v581 = vadd.f32 %v579, %v580
          %s582 = vtos %v581
          %v583 = vstv %s582
          %584 = vst [vmem:[%s323] sm:$0x1] %v583
        $region52: #{tpu_custom_call.1} parent=39 // pred_fallthru
          _
        %s585 = sand.u32 %s181, 1
        %s586 = scalar_lea.sflag [#allocation6], %s585
        %s587 = sand.u32 %s181, 1
        %s588 = scalar_lea.vmem [#allocation7], %s587
        // Predicated region
        $region53: #{tpu_custom_call.1} parent=39 // pred_check
          %p589 = pneg %p191
        $region54: #{tpu_custom_call.1} parent=39 // pred_check_branch
          %591 = sbr.rel (%p589) target = $region56
        $region55: #{tpu_custom_call.1} parent=39 // pred_region
          %593 = vsyncadd %s586, 0
          %s594 = scalar_lea.hbm %s5, %s27
          %s596 = sshll.u32 %s588, 4
          %s597 = int_to_ptr.vmem [resolvable:$true] %s596
          %s598 = sshll.u32 %s594, 4
          %s599 = int_to_ptr.hbm [resolvable:$true] %s598
          %601 = dma.vmem_to_hbm [thread:$0]  %s597, 16, %s599, %s586
        $region56: #{tpu_custom_call.1} parent=39 // pred_fallthru
          _
      $region40: #{tpu_custom_call.1} parent=5 // pred_fallthru
        _
      %p602 = scmp.le.s32.totalorder 2, %s18
      // Predicated region
      $region57: #{tpu_custom_call.1} parent=5 // pred_check
        %p603 = pneg %p602
      $region58: #{tpu_custom_call.1} parent=5 // pred_check_branch
        %605 = sbr.rel (%p603) target = $region60
      $region59: #{tpu_custom_call.1} parent=5 // pred_region
        %s606 = ssub.s32 %s18, 2
        // Predicated region
        $region61: #{tpu_custom_call.1} parent=59 // pred_check
          %p607 = pneg %p197
        $region62: #{tpu_custom_call.1} parent=59 // pred_check_branch
          %609 = sbr.rel (%p607) target = $region64
        $region63: #{tpu_custom_call.1} parent=59 // pred_region
          %s610 = sand.u32 %s182, 1
          %s611 = scalar_lea.sflag [#allocation6], %s610
          %s612 = sand.u32 %s182, 1
          %s613 = scalar_lea.vmem [#allocation7], %s612
          %615 = dma.done %s611, 16
        $region64: #{tpu_custom_call.1} parent=59 // pred_fallthru
          _
      $region60: #{tpu_custom_call.1} parent=5 // pred_fallthru
        _
    $region6: #{tpu_custom_call.1} parent=1 // loop_footer
      %s22 = sadd.s32 1, %s18
    $region7: #{tpu_custom_call.1} parent=1 // loop_footer_branch
      %17 = sbr.rel target = $region3
    $region8: #{tpu_custom_call.1} parent=1 // loop_exit
      _
    %616 = vsyncpa [#allocation5], 1
    %s617 = scalar_lea.sflag [#allocation5], 1
    %618 = vsyncpa %s617, 1
    %619 = vsyncpa [#allocation6], 1
    %s620 = scalar_lea.sflag [#allocation6], 1
    %621 = vsyncpa %s620, 1

</llo_original>
